<compile_context>
chip_gen: v7x
topology: tpu7x:2x2x1
jax: 0.10.0
libtpu: 0.0.40
codegen_flags: <defaults>
</compile_context>

<pallas_src>
import functools

import jax
import jax.numpy as jnp
from jax import lax
from jax.experimental import pallas as pl
from jax.experimental.pallas import tpu as pltpu


NOISE_MAGNITUDE = 0.0001


def _fmix32(h):
    # murmur3 finalizer: good avalanche, only shifts/xors/int-muls (VPU ops).
    h = h ^ (h >> 16)
    h = h * jnp.uint32(0x85EBCA6B)
    h = h ^ (h >> 13)
    h = h * jnp.uint32(0xC2B2AE35)
    h = h ^ (h >> 16)
    return h


def _noise_kernel(seed_ref, x_ref, o_ref, *, lo, hi, lane, block_rows):
    # Globally-unique per-element counter (unique across tiles / cores).
    base = pl.program_id(0) * (block_rows * lane)
    row = lax.broadcasted_iota(jnp.int32, (block_rows, lane), 0)
    col = lax.broadcasted_iota(jnp.int32, (block_rows, lane), 1)
    idx = (base + row * lane + col).astype(jnp.uint32)

    # Counter-based hash PRNG mixing in the seed (single 32-bit draw/element).
    seed_u = seed_ref[0].astype(jnp.uint32)
    h = _fmix32(idx * jnp.uint32(0x9E3779B1) + seed_u * jnp.uint32(0x85EBCA77))

    # bits 9..31 -> 23-bit mantissa -> uniform in [1,2) via bit trick,
    # then [0,1) with a single subtract (no int->float convert needed).
    mant = h >> jnp.uint32(9)
    u01 = lax.bitcast_convert_type(mant | jnp.uint32(0x3F800000),
                                   jnp.float32) - 1.0
    mag = lo + u01 * (hi - lo)                       # uniform in [lo, hi), > 0

    # bit 0 -> random sign, folded in by OR-ing the float sign bit.
    sign_bit = (h & jnp.uint32(1)) << 31
    noise = lax.bitcast_convert_type(
        lax.bitcast_convert_type(mag, jnp.uint32) | sign_bit, jnp.float32)

    # Add in f32, store back in the input's native dtype.
    o_ref[...] = (x_ref[...].astype(jnp.float32) + noise).astype(o_ref.dtype)


def noise_uniform(x, seed, noise_magnitude=NOISE_MAGNITUDE):
    """Apply uniform-type noise (as in the PyTorch `Noise` module) to x (NCHW)."""
    orig_shape = x.shape
    orig_dtype = x.dtype
    total = x.size

    # Lane-dense slab: widest lane width (multiple of 128) that divides total.
    lane = 128
    for cand in (1024, 512, 256, 128):
        if total % cand == 0:
            lane = cand
            break

    pad = (-total) % lane            # 0 for typical activation sizes
    flat = x.reshape(-1)
    if pad:                          # rare fallback; no-op when aligned
        flat = jnp.pad(flat, (0, pad))
    rows = flat.size // lane
    x2d = flat.reshape(rows, lane)

    # ~1 MiB blocks: VMEM-safe on v5e/v6e/v7x, good DMA/compute overlap.
    bytes_per_elem = jnp.dtype(orig_dtype).itemsize
    block_rows = max(8, ((1 << 20) // (bytes_per_elem * lane)) // 8 * 8)
    if block_rows >= rows:
        block_rows = rows            # single full block (exempt from 8-row rule)
    n_blocks = pl.cdiv(rows, block_rows)

    lo = noise_magnitude / 10.0
    hi = noise_magnitude
    kernel = functools.partial(_noise_kernel, lo=lo, hi=hi,
                               lane=lane, block_rows=block_rows)

    out2d = pl.pallas_call(
        kernel,
        out_shape=jax.ShapeDtypeStruct((rows, lane), orig_dtype),
        grid_spec=pltpu.PrefetchScalarGridSpec(
            num_scalar_prefetch=1,
            grid=(n_blocks,),
            in_specs=[pl.BlockSpec((block_rows, lane), lambda i, seed: (i, 0))],
            out_specs=pl.BlockSpec((block_rows, lane), lambda i, seed: (i, 0)),
        ),
        compiler_params=pltpu.CompilerParams(
            dimension_semantics=("parallel",)),
    )(jnp.asarray([seed], dtype=jnp.int32), x2d)

    out = out2d.reshape(-1)
    if pad:
        out = out[:total]
    return out.reshape(orig_shape)


# TODO(synk): the 'gaussian' branch (normal(0, 2) * magnitude) could be added
# with a Box-Muller transform on two hash draws; only the default 'uniform'
# type of the module is implemented here.


if __name__ == "__main__":
    key = jax.random.PRNGKey(0)
    x = jax.random.normal(key, (2, 4, 16, 16), dtype=jnp.float32)  # NCHW

    out = noise_uniform(x, seed=1234)
    out = jax.block_until_ready(out)

    # Sanity checks: shape/dtype preserved, perturbation bounded by magnitude,
    # both signs present.
    assert out.shape == x.shape and out.dtype == x.dtype
    delta = jnp.abs(out - x)
    assert bool(jnp.all(delta <= NOISE_MAGNITUDE + 1e-6))
    assert bool(jnp.all(delta >= NOISE_MAGNITUDE / 10.0 - 1e-6))
    assert bool(jnp.any(out > x)) and bool(jnp.any(out < x))

    print("KERNEL_OK")
</pallas_src>

<mosaic_0001>
module attributes {stable_mosaic.version = 11 : i64} {
  func.func @_noise_kernel(%arg0: i32, %arg1: memref<1xi32, #tpu.memory_space<smem>>, %arg2: memref<2x1024xf32, #tpu.memory_space<vmem>>, %arg3: memref<2x1024xf32, #tpu.memory_space<vmem>>) attributes {dimension_semantics = [#tpu.dimension_semantics<parallel>], iteration_bounds = array<i64: 1>, scalar_prefetch = 1 : i64, scratch_operands = 0 : i64, tpu.core_type = #tpu.core_type<tc>, window_params = [{transform_indices = @transform_0, window_bounds = array<i64: 2, 1024>}, {transform_indices = @transform_1, window_bounds = array<i64: 2, 1024>}]} {
    %c2048_i32 = arith.constant 2048 : i32
    %0 = arith.muli %arg0, %c2048_i32 : i32
    %1 = tpu.iota {dimensions = array<i32: 0>} : vector<2x1024xi32>
    %2 = tpu.iota {dimensions = array<i32: 1>} : vector<2x1024xi32>
    %c1024_i32 = arith.constant 1024 : i32
    %3 = vector.broadcast %c1024_i32 : i32 to vector<2x1024xi32>
    %4 = arith.muli %1, %3 : vector<2x1024xi32>
    %5 = vector.broadcast %0 : i32 to vector<2x1024xi32>
    %6 = arith.addi %5, %4 : vector<2x1024xi32>
    %7 = arith.addi %6, %2 : vector<2x1024xi32>
    %c0 = arith.constant 0 : index
    %8 = memref.load %arg1[%c0] : memref<1xi32, #tpu.memory_space<smem>>
    %c-1640531535_i32 = arith.constant -1640531535 : i32
    %9 = vector.broadcast %c-1640531535_i32 : i32 to vector<2x1024xi32>
    %10 = arith.muli %7, %9 : vector<2x1024xi32>
    %c-2048144777_i32 = arith.constant -2048144777 : i32
    %11 = arith.muli %8, %c-2048144777_i32 : i32
    %12 = vector.broadcast %11 : i32 to vector<2x1024xi32>
    %13 = arith.addi %10, %12 : vector<2x1024xi32>
    %c16_i32 = arith.constant 16 : i32
    %14 = vector.broadcast %c16_i32 : i32 to vector<2x1024xi32>
    %15 = arith.shrui %13, %14 : vector<2x1024xi32>
    %16 = arith.xori %13, %15 : vector<2x1024xi32>
    %c-2048144789_i32 = arith.constant -2048144789 : i32
    %17 = vector.broadcast %c-2048144789_i32 : i32 to vector<2x1024xi32>
    %18 = arith.muli %16, %17 : vector<2x1024xi32>
    %c13_i32 = arith.constant 13 : i32
    %19 = vector.broadcast %c13_i32 : i32 to vector<2x1024xi32>
    %20 = arith.shrui %18, %19 : vector<2x1024xi32>
    %21 = arith.xori %18, %20 : vector<2x1024xi32>
    %c-1028477387_i32 = arith.constant -1028477387 : i32
    %22 = vector.broadcast %c-1028477387_i32 : i32 to vector<2x1024xi32>
    %23 = arith.muli %21, %22 : vector<2x1024xi32>
    %c16_i32_0 = arith.constant 16 : i32
    %24 = vector.broadcast %c16_i32_0 : i32 to vector<2x1024xi32>
    %25 = arith.shrui %23, %24 : vector<2x1024xi32>
    %26 = arith.xori %23, %25 : vector<2x1024xi32>
    %c9_i32 = arith.constant 9 : i32
    %27 = vector.broadcast %c9_i32 : i32 to vector<2x1024xi32>
    %28 = arith.shrui %26, %27 : vector<2x1024xi32>
    %c1065353216_i32 = arith.constant 1065353216 : i32
    %29 = vector.broadcast %c1065353216_i32 : i32 to vector<2x1024xi32>
    %30 = arith.ori %28, %29 : vector<2x1024xi32>
    %31 = tpu.bitcast %30 : vector<2x1024xi32> -> vector<2x1024xf32>
    %cst = arith.constant 1.000000e+00 : f32
    %32 = vector.broadcast %cst : f32 to vector<2x1024xf32>
    %33 = arith.subf %31, %32 : vector<2x1024xf32>
    %cst_1 = arith.constant 9.000000e-05 : f32
    %34 = vector.broadcast %cst_1 : f32 to vector<2x1024xf32>
    %35 = arith.mulf %33, %34 : vector<2x1024xf32>
    %cst_2 = arith.constant 9.99999974E-6 : f32
    %36 = vector.broadcast %cst_2 : f32 to vector<2x1024xf32>
    %37 = arith.addf %36, %35 : vector<2x1024xf32>
    %c1_i32 = arith.constant 1 : i32
    %38 = vector.broadcast %c1_i32 : i32 to vector<2x1024xi32>
    %39 = arith.andi %26, %38 : vector<2x1024xi32>
    %c31_i32 = arith.constant 31 : i32
    %40 = vector.broadcast %c31_i32 : i32 to vector<2x1024xi32>
    %41 = arith.shli %39, %40 : vector<2x1024xi32>
    %42 = tpu.bitcast %37 : vector<2x1024xf32> -> vector<2x1024xi32>
    %43 = arith.ori %42, %41 : vector<2x1024xi32>
    %44 = tpu.bitcast %43 : vector<2x1024xi32> -> vector<2x1024xf32>
    %c0_3 = arith.constant 0 : index
    %c0_4 = arith.constant 0 : index
    %45 = vector.load %arg2[%c0_3, %c0_4] : memref<2x1024xf32, #tpu.memory_space<vmem>>, vector<2x1024xf32>
    %46 = arith.addf %45, %44 : vector<2x1024xf32>
    %c0_5 = arith.constant 0 : index
    %c0_6 = arith.constant 0 : index
    %47 = vector.load %arg3[%c0_5, %c0_6] : memref<2x1024xf32, #tpu.memory_space<vmem>>, vector<2x1024xf32>
    tpu.vector_store %arg3[%c0_5, %c0_6], %46 {strides = array<i32>} : memref<2x1024xf32, #tpu.memory_space<vmem>>, vector<2x1024xf32>,
    return
  }
  func.func @transform_0(%arg0: i32, %arg1: memref<1xi32, #tpu.memory_space<smem>>) -> (i32, i32) {
    %c0_i32 = arith.constant 0 : i32
    %c0_i32_0 = arith.constant 0 : i32
    return %arg0, %c0_i32 : i32, i32
  }
  func.func @transform_1(%arg0: i32, %arg1: memref<1xi32, #tpu.memory_space<smem>>) -> (i32, i32) {
    %c0_i32 = arith.constant 0 : i32
    %c0_i32_0 = arith.constant 0 : i32
    return %arg0, %c0_i32 : i32, i32
  }
}

</mosaic_0001>

<llo_original>
// kernel: tpu_custom_call.1
$region0: #{tpu_custom_call.1}
  #allocation0 [shape = 'u32[]', space=smem, size = 0x4, offset = 0x4, fixed_abs, tag = 'smem constant byte address 0x4 - core index']
  #allocation1 [shape = 'u32[144,128]{1,0:T(1,128)}', space=vmem, size = 0x12000, scoped, tag = 'internal scratch']
  #allocation2 [shape = 's32[1]{0}', space=sflag, size = 0x4, scoped, tag = 'scoped memory for tpu_custom_call.1']
  #allocation3 [shape = 's32[1]{0:T(128)S(6)}', space=smem, size = 0x200, scoped, tag = 'prefetched SMEM operand 0']
  %s0 = inlined_call_operand.<no memory space> [shape: s32[1], index: 0, kind: input, shape index: {}]
  %s1 = inlined_call_operand.hbm [shape: f32[2,1024], index: 1, kind: input, shape index: {}]
  %s2 = inlined_call_operand.hbm [shape: f32[2,1024], index: 2, kind: output, shape index: {}]
  %s3 = sld [smem:[#allocation0]]
  $region18: #{tpu_custom_call.1} parent=0
    _
  %s5 = ssub.s32 1, %s3
  %s6 = scalar_select 0, %s5, %s3
  %7 = sst [smem:[#allocation3]] %s0
  $region1: #{tpu_custom_call.1} parent=0
    #allocation4 [shape = 'u8[8192]{0}', space=vmem, size = 0x2000, scoped, tag = 'input window, operand 1, single buffered']
    #allocation5 [shape = 's32[1]{0}', space=sflag, size = 0x4, scoped, tag = 'scoped memory for tpu_custom_call.1']
    #allocation6 [shape = 's32[1]{0}', space=sflag, size = 0x4, scoped, tag = 'scoped memory for tpu_custom_call.1']
    #allocation7 [shape = 'u8[8192]{0}', space=vmem, size = 0x2000, scoped, tag = 'output window, operand 0, single buffered']
    %8 = vsyncpa [#allocation5], 0
    %9 = vsyncpa [#allocation6], 0
    // Predicated region
    $region2: #{tpu_custom_call.1} parent=1 // pred_check
      _
    $region3: #{tpu_custom_call.1} parent=1 // pred_check_branch
      %11 = sbr.rel (0) target = $region5
    $region4: #{tpu_custom_call.1} parent=1 // pred_region
      %s13 = ssub.s32 256, 256
      %14 = vsyncadd [#allocation5], %s13
      %s16 = sshll.u32 [#allocation4], 4
      %s17 = int_to_ptr.vmem [resolvable:$true] %s16
      %19 = dma.hbm_to_vmem [thread:$0]  %s1, 256, %s17, [#allocation5]
    $region5: #{tpu_custom_call.1} parent=1 // pred_fallthru
      _
    // Predicated region
    $region6: #{tpu_custom_call.1} parent=1 // pred_check
      _
    $region7: #{tpu_custom_call.1} parent=1 // pred_check_branch
      %21 = sbr.rel (0) target = $region9
    $region8: #{tpu_custom_call.1} parent=1 // pred_region
      %22 = dma.done [#allocation5], 256
    $region9: #{tpu_custom_call.1} parent=1 // pred_fallthru
      _
    %s23 = smul.u32 0, 2048
    %v24 = vlaneseq
    %v25 = vshrl.u32 %v24, 7
    %v26 = vlaneseq
    %v27 = vand.u32 %v26, 127
    %v28 = vadd.s32 %v27, 128
    %v29 = vadd.s32 %v27, 256
    %v30 = vadd.s32 %v27, 384
    %v31 = vadd.s32 %v27, 512
    %v32 = vadd.s32 %v27, 640
    %v33 = vadd.s32 %v27, 768
    %v34 = vadd.s32 %v27, 896
    %v35 = vmul.u32 %v25, 1024
    %v36 = vstv %s23
    %v37 = vadd.s32 %v36, %v35
    %v38 = vadd.s32 %v37, %v27
    %v39 = vadd.s32 %v37, %v28
    %v40 = vadd.s32 %v37, %v29
    %v41 = vadd.s32 %v37, %v30
    %v42 = vadd.s32 %v37, %v31
    %v43 = vadd.s32 %v37, %v32
    %v44 = vadd.s32 %v37, %v33
    %v45 = vadd.s32 %v37, %v34
    %s46 = sld [smem:[#allocation3]]
    %v47 = vmul.u32 %v38, 2654435761
    %v48 = vmul.u32 %v39, 2654435761
    %v49 = vmul.u32 %v40, 2654435761
    %v50 = vmul.u32 %v41, 2654435761
    %v51 = vmul.u32 %v42, 2654435761
    %v52 = vmul.u32 %v43, 2654435761
    %v53 = vmul.u32 %v44, 2654435761
    %v54 = vmul.u32 %v45, 2654435761
    %s55 = smul.u32 %s46, 2246822519
    %v56 = vstv %s55
    %v57 = vadd.s32 %v47, %v56
    %v58 = vadd.s32 %v48, %v56
    %v59 = vadd.s32 %v49, %v56
    %v60 = vadd.s32 %v50, %v56
    %v61 = vadd.s32 %v51, %v56
    %v62 = vadd.s32 %v52, %v56
    %v63 = vadd.s32 %v53, %v56
    %v64 = vadd.s32 %v54, %v56
    %v65 = vshrl.u32 %v57, 16
    %v66 = vshrl.u32 %v58, 16
    %v67 = vshrl.u32 %v59, 16
    %v68 = vshrl.u32 %v60, 16
    %v69 = vshrl.u32 %v61, 16
    %v70 = vshrl.u32 %v62, 16
    %v71 = vshrl.u32 %v63, 16
    %v72 = vshrl.u32 %v64, 16
    %v73 = vxor.u32 %v57, %v65
    %v74 = vxor.u32 %v58, %v66
    %v75 = vxor.u32 %v59, %v67
    %v76 = vxor.u32 %v60, %v68
    %v77 = vxor.u32 %v61, %v69
    %v78 = vxor.u32 %v62, %v70
    %v79 = vxor.u32 %v63, %v71
    %v80 = vxor.u32 %v64, %v72
    %v81 = vmul.u32 %v73, 2246822507
    %v82 = vmul.u32 %v74, 2246822507
    %v83 = vmul.u32 %v75, 2246822507
    %v84 = vmul.u32 %v76, 2246822507
    %v85 = vmul.u32 %v77, 2246822507
    %v86 = vmul.u32 %v78, 2246822507
    %v87 = vmul.u32 %v79, 2246822507
    %v88 = vmul.u32 %v80, 2246822507
    %v89 = vshrl.u32 %v81, 13
    %v90 = vshrl.u32 %v82, 13
    %v91 = vshrl.u32 %v83, 13
    %v92 = vshrl.u32 %v84, 13
    %v93 = vshrl.u32 %v85, 13
    %v94 = vshrl.u32 %v86, 13
    %v95 = vshrl.u32 %v87, 13
    %v96 = vshrl.u32 %v88, 13
    %v97 = vxor.u32 %v81, %v89
    %v98 = vxor.u32 %v82, %v90
    %v99 = vxor.u32 %v83, %v91
    %v100 = vxor.u32 %v84, %v92
    %v101 = vxor.u32 %v85, %v93
    %v102 = vxor.u32 %v86, %v94
    %v103 = vxor.u32 %v87, %v95
    %v104 = vxor.u32 %v88, %v96
    %v105 = vmul.u32 %v97, 3266489909
    %v106 = vmul.u32 %v98, 3266489909
    %v107 = vmul.u32 %v99, 3266489909
    %v108 = vmul.u32 %v100, 3266489909
    %v109 = vmul.u32 %v101, 3266489909
    %v110 = vmul.u32 %v102, 3266489909
    %v111 = vmul.u32 %v103, 3266489909
    %v112 = vmul.u32 %v104, 3266489909
    %v113 = vshrl.u32 %v105, 16
    %v114 = vshrl.u32 %v106, 16
    %v115 = vshrl.u32 %v107, 16
    %v116 = vshrl.u32 %v108, 16
    %v117 = vshrl.u32 %v109, 16
    %v118 = vshrl.u32 %v110, 16
    %v119 = vshrl.u32 %v111, 16
    %v120 = vshrl.u32 %v112, 16
    %v121 = vxor.u32 %v105, %v113
    %v122 = vxor.u32 %v106, %v114
    %v123 = vxor.u32 %v107, %v115
    %v124 = vxor.u32 %v108, %v116
    %v125 = vxor.u32 %v109, %v117
    %v126 = vxor.u32 %v110, %v118
    %v127 = vxor.u32 %v111, %v119
    %v128 = vxor.u32 %v112, %v120
    %v129 = vshrl.u32 %v121, 9
    %v130 = vshrl.u32 %v122, 9
    %v131 = vshrl.u32 %v123, 9
    %v132 = vshrl.u32 %v124, 9
    %v133 = vshrl.u32 %v125, 9
    %v134 = vshrl.u32 %v126, 9
    %v135 = vshrl.u32 %v127, 9
    %v136 = vshrl.u32 %v128, 9
    %v137 = vor.u32 %v129, 1065353216
    %v138 = vor.u32 %v130, 1065353216
    %v139 = vor.u32 %v131, 1065353216
    %v140 = vor.u32 %v132, 1065353216
    %v141 = vor.u32 %v133, 1065353216
    %v142 = vor.u32 %v134, 1065353216
    %v143 = vor.u32 %v135, 1065353216
    %v144 = vor.u32 %v136, 1065353216
    %v153 = vsub.f32 %v137, 1.0
    %v154 = vsub.f32 %v138, 1.0
    %v155 = vsub.f32 %v139, 1.0
    %v156 = vsub.f32 %v140, 1.0
    %v157 = vsub.f32 %v141, 1.0
    %v158 = vsub.f32 %v142, 1.0
    %v159 = vsub.f32 %v143, 1.0
    %v160 = vsub.f32 %v144, 1.0
    %v161 = vmul.f32 %v153, 9e-05
    %v162 = vmul.f32 %v154, 9e-05
    %v163 = vmul.f32 %v155, 9e-05
    %v164 = vmul.f32 %v156, 9e-05
    %v165 = vmul.f32 %v157, 9e-05
    %v166 = vmul.f32 %v158, 9e-05
    %v167 = vmul.f32 %v159, 9e-05
    %v168 = vmul.f32 %v160, 9e-05
    %v169 = vadd.f32 %v161, 1e-05
    %v170 = vadd.f32 %v162, 1e-05
    %v171 = vadd.f32 %v163, 1e-05
    %v172 = vadd.f32 %v164, 1e-05
    %v173 = vadd.f32 %v165, 1e-05
    %v174 = vadd.f32 %v166, 1e-05
    %v175 = vadd.f32 %v167, 1e-05
    %v176 = vadd.f32 %v168, 1e-05
    %v177 = vand.u32 %v121, 1
    %v178 = vand.u32 %v122, 1
    %v179 = vand.u32 %v123, 1
    %v180 = vand.u32 %v124, 1
    %v181 = vand.u32 %v125, 1
    %v182 = vand.u32 %v126, 1
    %v183 = vand.u32 %v127, 1
    %v184 = vand.u32 %v128, 1
    %v185 = vshll.u32 %v177, 31
    %v186 = vshll.u32 %v178, 31
    %v187 = vshll.u32 %v179, 31
    %v188 = vshll.u32 %v180, 31
    %v189 = vshll.u32 %v181, 31
    %v190 = vshll.u32 %v182, 31
    %v191 = vshll.u32 %v183, 31
    %v192 = vshll.u32 %v184, 31
    %v201 = vor.u32 %v169, %v185
    %v202 = vor.u32 %v170, %v186
    %v203 = vor.u32 %v171, %v187
    %v204 = vor.u32 %v172, %v188
    %v205 = vor.u32 %v173, %v189
    %v206 = vor.u32 %v174, %v190
    %v207 = vor.u32 %v175, %v191
    %v208 = vor.u32 %v176, %v192
    %v209 = vld [vmem:[#allocation4] sm:$0xff]
    %v210 = vld [vmem:[#allocation4 + $0x8] sm:$0xff]
    %v211 = vcombine.low %v201, %v202
    %v212 = vcombine.low %v203, %v204
    %v214 = vunpack.c.l.s4 1983009808
    %v215 = vunpack.c.0.s8 %v214
    %v216 = vlaneseq
    %v217 = vshrl.u32 %v216, 7
    %v218 = vsub.s32 %v215, %v217
    %v219 = vrot.slane %v211, %v218
    %v221 = vunpack.c.l.s4 1983009808
    %v222 = vunpack.c.0.s8 %v221
    %v223 = vlaneseq
    %v224 = vshrl.u32 %v223, 7
    %v225 = vsub.s32 %v222, %v224
    %v226 = vrot.slane %v212, %v225
    %v227 = vcombine.low %v219, %v226
    %v228 = vcombine.low %v205, %v206
    %v229 = vcombine.low %v207, %v208
    %v231 = vunpack.c.l.s4 1983009808
    %v232 = vunpack.c.0.s8 %v231
    %v233 = vlaneseq
    %v234 = vshrl.u32 %v233, 7
    %v235 = vsub.s32 %v232, %v234
    %v236 = vrot.slane %v228, %v235
    %v238 = vunpack.c.l.s4 1983009808
    %v239 = vunpack.c.0.s8 %v238
    %v240 = vlaneseq
    %v241 = vshrl.u32 %v240, 7
    %v242 = vsub.s32 %v239, %v241
    %v243 = vrot.slane %v229, %v242
    %v244 = vcombine.low %v236, %v243
    %v247 = vadd.f32 %v209, %v227
    %v248 = vadd.f32 %v210, %v244
    %249 = vst [vmem:[#allocation7] sm:$0xff] %v247
    %250 = vst [vmem:[#allocation7 + $0x8] sm:$0xff] %v248
    // Predicated region
    $region10: #{tpu_custom_call.1} parent=1 // pred_check
      _
    $region11: #{tpu_custom_call.1} parent=1 // pred_check_branch
      %252 = sbr.rel (0) target = $region13
    $region12: #{tpu_custom_call.1} parent=1 // pred_region
      %s254 = ssub.s32 256, 256
      %255 = vsyncadd [#allocation6], %s254
      %s257 = sshll.u32 [#allocation7], 4
      %s258 = int_to_ptr.vmem [resolvable:$true] %s257
      %260 = dma.vmem_to_hbm [thread:$0]  %s258, 256, %s2, [#allocation6]
    $region13: #{tpu_custom_call.1} parent=1 // pred_fallthru
      _
    // Predicated region
    $region14: #{tpu_custom_call.1} parent=1 // pred_check
      _
    $region15: #{tpu_custom_call.1} parent=1 // pred_check_branch
      %262 = sbr.rel (0) target = $region17
    $region16: #{tpu_custom_call.1} parent=1 // pred_region
      %263 = dma.done [#allocation6], 256
    $region17: #{tpu_custom_call.1} parent=1 // pred_fallthru
      _
    %264 = vsyncpa [#allocation5], 1
    %265 = vsyncpa [#allocation6], 1

</llo_original>
